<compile_context>
chip_gen: v5e
topology: v5e:2x2
jax: 0.10.0
libtpu: 0.0.40
codegen_flags: <defaults>
</compile_context>

<pallas_src>
import jax
import jax.numpy as jnp
from jax.experimental import pallas as pl
from jax.experimental.pallas import tpu as pltpu


_FULL_UNROLL_MAX_CLASSES = 16   # fully unroll class loops up to this many classes
_CLASS_LOOP_UNROLL = 8          # bounded unroll for larger class counts
_MAX_TILE_ROWS = 2048           # keeps each (TR, 128) f32 temporary <= 1 MiB


def _round_up(x, m):
    return ((x + m - 1) // m) * m


def _cdiv(a, b):
    return -(-a // b)


def _default_tile_budget_bytes():
    """Generation-aware per-input-block byte budget.  The kernel is HBM-bound,
    so bigger blocks amortize the ~0.35 us per-grid-step overhead; v5e keeps a
    smaller budget to stay friendly to its 16 MiB scoped-VMEM default."""
    try:
        kind = jax.devices()[0].device_kind.lower()
    except Exception:
        kind = ""
    if "v5" in kind or "v4" in kind or "v3" in kind:
        return 2 * 1024 * 1024
    return 4 * 1024 * 1024          # v6e / v7x (explicit vmem_limit set below)


def _make_ce_kernel(C, TR, NI, S_valid, S_total):
    needs_mask = (S_total != S_valid)   # static: mask only if spatial tail padded

    def kernel(pred_ref, tgt_ref, acc_ref):
        # pred_ref / tgt_ref: (C, TR, 128); acc_ref: (TR, 128) per-(batch, outer)
        # accumulator, VMEM-resident across the innermost spatial grid axis.
        s = pl.program_id(2)

        @pl.when(s == 0)
        def _init():
            acc_ref[...] = jnp.zeros_like(acc_ref)

        p0 = pred_ref[0].astype(jnp.float32)      # (TR, 128)
        t0 = tgt_ref[0].astype(jnp.float32)

        if C <= _FULL_UNROLL_MAX_CLASSES:
            # Fused pass 1: running class max + argmax(target) pick.
            m, best_t, picked = p0, t0, p0
            for c in range(1, C):
                pc = pred_ref[c].astype(jnp.float32)
                tc = tgt_ref[c].astype(jnp.float32)
                m = jnp.maximum(m, pc)
                upd = tc > best_t   # strict '>' == torch.argmax first-index ties
                best_t = jnp.where(upd, tc, best_t)
                picked = jnp.where(upd, pc, picked)
            # Pass 2: sum of exp(pred - m) over classes.
            se = jnp.exp(p0 - m)
            for c in range(1, C):
                se = se + jnp.exp(pred_ref[c].astype(jnp.float32) - m)
        else:
            def body1(c, carry):
                m, best_t, picked = carry
                pc = pred_ref[c].astype(jnp.float32)
                tc = tgt_ref[c].astype(jnp.float32)
                m = jnp.maximum(m, pc)
                upd = tc > best_t
                return (m, jnp.where(upd, tc, best_t), jnp.where(upd, pc, picked))

            m, best_t, picked = jax.lax.fori_loop(
                1, C, body1, (p0, t0, p0), unroll=_CLASS_LOOP_UNROLL)

            def body2(c, se):
                return se + jnp.exp(pred_ref[c].astype(jnp.float32) - m)

            se = jax.lax.fori_loop(
                1, C, body2, jnp.exp(p0 - m), unroll=_CLASS_LOOP_UNROLL)

        contrib = (m + jnp.log(se)) - picked      # logsumexp - pred[argmax(tgt)]

        if needs_mask:
            blk = pl.program_id(1) * NI + s
            row = jax.lax.broadcasted_iota(jnp.int32, (TR, 128), 0)
            lane = jax.lax.broadcasted_iota(jnp.int32, (TR, 128), 1)
            pos = (blk * TR + row) * 128 + lane
            contrib = jnp.where(pos < S_valid, contrib, jnp.float32(0.0))

        acc_ref[...] += contrib

    return kernel


def cross_entropy_loss(prediction, target, *, tile_budget_bytes=None):
    """CrossEntropy_Loss.forward: labels = argmax(target, axis=1); mean cross
    entropy of `prediction` vs labels (default module config: no class
    weights, ignore_index never hit, reduction='mean')."""
    B, C, H, W = prediction.shape
    assert target.shape == prediction.shape
    S = H * W

    if tile_budget_bytes is None:
        tile_budget_bytes = _default_tile_budget_bytes()

    pred_isz = jnp.dtype(prediction.dtype).itemsize
    tgt_isz = jnp.dtype(target.dtype).itemsize
    # Sublane alignment of the (TR, 128) block: 8 for f32, 16 for bf16, ...
    row_align = max(8, 32 // min(pred_isz, tgt_isz))

    R0 = _cdiv(S, 128)
    row_bytes = C * 128 * max(pred_isz, tgt_isz)
    max_rows = max(row_align,
                   (tile_budget_bytes // row_bytes) // row_align * row_align)
    max_rows = min(max_rows, _MAX_TILE_ROWS)

    # Guarantee >=2 parallel grid blocks for v7x megacore even when B == 1.
    want_split = (B == 1) and (R0 >= 2 * row_align)
    if not want_split and R0 <= max_rows:
        TR, NB = R0, 1          # full-extent row block: no alignment / padding
    else:
        min_blocks = 2 if want_split else 1
        NB = max(min_blocks, _cdiv(R0, max_rows))
        TR = _round_up(_cdiv(R0, NB), row_align)   # balanced -> minimal padding
        NB = _cdiv(R0, TR)
        if want_split:
            NB = _round_up(NB, 2)
    NO = 2 if want_split else 1
    NI = NB // NO

    R = NB * TR
    S_total = R * 128

    # Native-layout reshapes (free); pad the flattened spatial tail if needed.
    pred3 = prediction.reshape(B, C, S)
    tgt3 = target.reshape(B, C, S)
    if S_total != S:
        pad = ((0, 0), (0, 0), (0, S_total - S))
        pred3 = jnp.pad(pred3, pad)
        tgt3 = jnp.pad(tgt3, pad)
    pred4 = pred3.reshape(B, C, R, 128)
    tgt4 = tgt3.reshape(B, C, R, 128)

    # Explicit scoped-VMEM request: 2 pipeline buffers per input + double-
    # buffered accumulator + elementwise temporaries, capped at 32 MiB so the
    # same code is safe on v7x (64 MiB physical VMEM per TC).
    pred_blk = C * TR * 128 * pred_isz
    tgt_blk = C * TR * 128 * tgt_isz
    acc_blk = TR * 128 * 4
    need = 2 * (pred_blk + tgt_blk) + 10 * acc_blk + (2 << 20)
    vmem_limit = int(min(max(need, 16 << 20), 32 << 20))

    kernel = _make_ce_kernel(C, TR, NI, S, S_total)

    partials = pl.pallas_call(
        kernel,
        out_shape=jax.ShapeDtypeStruct((B, NO, TR, 128), jnp.float32),
        grid_spec=pltpu.PrefetchScalarGridSpec(
            num_scalar_prefetch=0,
            grid=(B, NO, NI),
            in_specs=[
                pl.BlockSpec((None, C, TR, 128),
                             lambda b, no, s: (b, 0, no * NI + s, 0)),
                pl.BlockSpec((None, C, TR, 128),
                             lambda b, no, s: (b, 0, no * NI + s, 0)),
            ],
            out_specs=pl.BlockSpec((None, None, TR, 128),
                                   lambda b, no, s: (b, no, 0, 0)),
        ),
        compiler_params=pltpu.CompilerParams(
            # (batch, outer-spatial) parallel -> megacore-shardable;
            # inner spatial axis is the resident-accumulator reduction.
            dimension_semantics=("parallel", "parallel", "arbitrary"),
            vmem_limit_bytes=vmem_limit,
        ),
    )(pred4, tgt4)

    # reduction='mean' over all B*H*W positions (padded positions contribute 0).
    return jnp.sum(partials) / jnp.float32(B * S)


def _reference(prediction, target):
    """Pure-JAX reference replicating torch.nn.CrossEntropyLoss semantics."""
    B, C, H, W = prediction.shape
    pred2d = jnp.transpose(prediction, (0, 2, 3, 1)).reshape(-1, C).astype(jnp.float32)
    tgt2d = jnp.transpose(target, (0, 2, 3, 1)).reshape(-1, C)
    labels = jnp.argmax(tgt2d, axis=-1)
    logz = jax.scipy.special.logsumexp(pred2d, axis=-1)
    picked = jnp.take_along_axis(pred2d, labels[:, None], axis=-1)[:, 0]
    return jnp.mean(logz - picked)


if __name__ == "__main__":
    key = jax.random.PRNGKey(0)
    k1, k2 = jax.random.split(key)

    B, C, H, W = 2, 4, 16, 16
    prediction = jax.random.normal(k1, (B, C, H, W), dtype=jnp.float32)
    target = jax.random.normal(k2, (B, C, H, W), dtype=jnp.float32)  # argmax over C -> labels

    loss = jax.block_until_ready(cross_entropy_loss(prediction, target))
    ref = jax.block_until_ready(_reference(prediction, target))

    assert jnp.allclose(loss, ref, rtol=1e-5, atol=1e-5), (loss, ref)
    print("KERNEL_OK")
</pallas_src>

<mosaic_0001>
module attributes {stable_mosaic.version = 11 : i64} {
  func.func @kernel(%arg0: i32, %arg1: i32, %arg2: i32, %arg3: memref<1x4x2x128xf32, #tpu.memory_space<vmem>>, %arg4: memref<1x4x2x128xf32, #tpu.memory_space<vmem>>, %arg5: memref<1x1x2x128xf32, #tpu.memory_space<vmem>>) attributes {dimension_semantics = [#tpu.dimension_semantics<parallel>, #tpu.dimension_semantics<parallel>, #tpu.dimension_semantics<arbitrary>], iteration_bounds = array<i64: 2, 1, 1>, scalar_prefetch = 0 : i64, scratch_operands = 0 : i64, tpu.core_type = #tpu.core_type<tc>, window_params = [{transform_indices = @transform_0, window_bounds = array<i64: 1, 4, 2, 128>}, {transform_indices = @transform_1, window_bounds = array<i64: 1, 4, 2, 128>}, {transform_indices = @transform_2, window_bounds = array<i64: 1, 1, 2, 128>}]} {
    %c0_i32 = arith.constant 0 : i32
    %0 = arith.cmpi eq, %arg2, %c0_i32 : i32
    %1 = arith.extui %0 : i1 to i32
    %c0_i32_0 = arith.constant 0 : i32
    %2 = arith.cmpi ne, %1, %c0_i32_0 : i32
    scf.if %2 {
      %cst = arith.constant 0.000000e+00 : f32
      %56 = vector.broadcast %cst : f32 to vector<2x128xf32>
      %c0_49 = arith.constant 0 : index
      %c0_50 = arith.constant 0 : index
      %c0_51 = arith.constant 0 : index
      %c0_52 = arith.constant 0 : index
      %57 = vector.load %arg5[%c0_49, %c0_50, %c0_51, %c0_52] : memref<1x1x2x128xf32, #tpu.memory_space<vmem>>, vector<1x1x2x128xf32>
      %58 = vector.shape_cast %57 : vector<1x1x2x128xf32> to vector<2x128xf32>
      %59 = vector.shape_cast %56 : vector<2x128xf32> to vector<1x1x2x128xf32>
      tpu.vector_store %arg5[%c0_49, %c0_50, %c0_51, %c0_52], %59 {strides = array<i32>} : memref<1x1x2x128xf32, #tpu.memory_space<vmem>>, vector<1x1x2x128xf32>,
    } else {
    }
    %c0 = arith.constant 0 : index
    %c0_1 = arith.constant 0 : index
    %c0_2 = arith.constant 0 : index
    %c0_3 = arith.constant 0 : index
    %3 = vector.load %arg3[%c0, %c0_1, %c0_2, %c0_3] : memref<1x4x2x128xf32, #tpu.memory_space<vmem>>, vector<1x1x2x128xf32>
    %4 = vector.shape_cast %3 : vector<1x1x2x128xf32> to vector<2x128xf32>
    %c0_4 = arith.constant 0 : index
    %c0_5 = arith.constant 0 : index
    %c0_6 = arith.constant 0 : index
    %c0_7 = arith.constant 0 : index
    %5 = vector.load %arg4[%c0_4, %c0_5, %c0_6, %c0_7] : memref<1x4x2x128xf32, #tpu.memory_space<vmem>>, vector<1x1x2x128xf32>
    %6 = vector.shape_cast %5 : vector<1x1x2x128xf32> to vector<2x128xf32>
    %c0_8 = arith.constant 0 : index
    %c1 = arith.constant 1 : index
    %c0_9 = arith.constant 0 : index
    %c0_10 = arith.constant 0 : index
    %7 = vector.load %arg3[%c0_8, %c1, %c0_9, %c0_10] : memref<1x4x2x128xf32, #tpu.memory_space<vmem>>, vector<1x1x2x128xf32>
    %8 = vector.shape_cast %7 : vector<1x1x2x128xf32> to vector<2x128xf32>
    %c0_11 = arith.constant 0 : index
    %c1_12 = arith.constant 1 : index
    %c0_13 = arith.constant 0 : index
    %c0_14 = arith.constant 0 : index
    %9 = vector.load %arg4[%c0_11, %c1_12, %c0_13, %c0_14] : memref<1x4x2x128xf32, #tpu.memory_space<vmem>>, vector<1x1x2x128xf32>
    %10 = vector.shape_cast %9 : vector<1x1x2x128xf32> to vector<2x128xf32>
    %11 = arith.maximumf %4, %8 : vector<2x128xf32>
    %12 = arith.cmpf ogt, %10, %6 : vector<2x128xf32>
    %13 = arith.select %12, %10, %6 : vector<2x128xi1>, vector<2x128xf32>
    %14 = arith.select %12, %8, %4 : vector<2x128xi1>, vector<2x128xf32>
    %c0_15 = arith.constant 0 : index
    %c2 = arith.constant 2 : index
    %c0_16 = arith.constant 0 : index
    %c0_17 = arith.constant 0 : index
    %15 = vector.load %arg3[%c0_15, %c2, %c0_16, %c0_17] : memref<1x4x2x128xf32, #tpu.memory_space<vmem>>, vector<1x1x2x128xf32>
    %16 = vector.shape_cast %15 : vector<1x1x2x128xf32> to vector<2x128xf32>
    %c0_18 = arith.constant 0 : index
    %c2_19 = arith.constant 2 : index
    %c0_20 = arith.constant 0 : index
    %c0_21 = arith.constant 0 : index
    %17 = vector.load %arg4[%c0_18, %c2_19, %c0_20, %c0_21] : memref<1x4x2x128xf32, #tpu.memory_space<vmem>>, vector<1x1x2x128xf32>
    %18 = vector.shape_cast %17 : vector<1x1x2x128xf32> to vector<2x128xf32>
    %19 = arith.maximumf %11, %16 : vector<2x128xf32>
    %20 = arith.cmpf ogt, %18, %13 : vector<2x128xf32>
    %21 = arith.select %20, %18, %13 : vector<2x128xi1>, vector<2x128xf32>
    %22 = arith.select %20, %16, %14 : vector<2x128xi1>, vector<2x128xf32>
    %c0_22 = arith.constant 0 : index
    %c3 = arith.constant 3 : index
    %c0_23 = arith.constant 0 : index
    %c0_24 = arith.constant 0 : index
    %23 = vector.load %arg3[%c0_22, %c3, %c0_23, %c0_24] : memref<1x4x2x128xf32, #tpu.memory_space<vmem>>, vector<1x1x2x128xf32>
    %24 = vector.shape_cast %23 : vector<1x1x2x128xf32> to vector<2x128xf32>
    %c0_25 = arith.constant 0 : index
    %c3_26 = arith.constant 3 : index
    %c0_27 = arith.constant 0 : index
    %c0_28 = arith.constant 0 : index
    %25 = vector.load %arg4[%c0_25, %c3_26, %c0_27, %c0_28] : memref<1x4x2x128xf32, #tpu.memory_space<vmem>>, vector<1x1x2x128xf32>
    %26 = vector.shape_cast %25 : vector<1x1x2x128xf32> to vector<2x128xf32>
    %27 = arith.maximumf %19, %24 : vector<2x128xf32>
    %28 = arith.cmpf ogt, %26, %21 : vector<2x128xf32>
    %29 = arith.select %28, %24, %22 : vector<2x128xi1>, vector<2x128xf32>
    %30 = arith.subf %4, %27 : vector<2x128xf32>
    %31 = math.exp %30 : vector<2x128xf32>
    %c0_29 = arith.constant 0 : index
    %c1_30 = arith.constant 1 : index
    %c0_31 = arith.constant 0 : index
    %c0_32 = arith.constant 0 : index
    %32 = vector.load %arg3[%c0_29, %c1_30, %c0_31, %c0_32] : memref<1x4x2x128xf32, #tpu.memory_space<vmem>>, vector<1x1x2x128xf32>
    %33 = vector.shape_cast %32 : vector<1x1x2x128xf32> to vector<2x128xf32>
    %34 = arith.subf %33, %27 : vector<2x128xf32>
    %35 = math.exp %34 : vector<2x128xf32>
    %36 = arith.addf %31, %35 : vector<2x128xf32>
    %c0_33 = arith.constant 0 : index
    %c2_34 = arith.constant 2 : index
    %c0_35 = arith.constant 0 : index
    %c0_36 = arith.constant 0 : index
    %37 = vector.load %arg3[%c0_33, %c2_34, %c0_35, %c0_36] : memref<1x4x2x128xf32, #tpu.memory_space<vmem>>, vector<1x1x2x128xf32>
    %38 = vector.shape_cast %37 : vector<1x1x2x128xf32> to vector<2x128xf32>
    %39 = arith.subf %38, %27 : vector<2x128xf32>
    %40 = math.exp %39 : vector<2x128xf32>
    %41 = arith.addf %36, %40 : vector<2x128xf32>
    %c0_37 = arith.constant 0 : index
    %c3_38 = arith.constant 3 : index
    %c0_39 = arith.constant 0 : index
    %c0_40 = arith.constant 0 : index
    %42 = vector.load %arg3[%c0_37, %c3_38, %c0_39, %c0_40] : memref<1x4x2x128xf32, #tpu.memory_space<vmem>>, vector<1x1x2x128xf32>
    %43 = vector.shape_cast %42 : vector<1x1x2x128xf32> to vector<2x128xf32>
    %44 = arith.subf %43, %27 : vector<2x128xf32>
    %45 = math.exp %44 : vector<2x128xf32>
    %46 = arith.addf %41, %45 : vector<2x128xf32>
    %47 = math.log %46 : vector<2x128xf32>
    %48 = arith.addf %27, %47 : vector<2x128xf32>
    %49 = arith.subf %48, %29 : vector<2x128xf32>
    %c0_41 = arith.constant 0 : index
    %c0_42 = arith.constant 0 : index
    %c0_43 = arith.constant 0 : index
    %c0_44 = arith.constant 0 : index
    %50 = vector.load %arg5[%c0_41, %c0_42, %c0_43, %c0_44] : memref<1x1x2x128xf32, #tpu.memory_space<vmem>>, vector<1x1x2x128xf32>
    %51 = vector.shape_cast %50 : vector<1x1x2x128xf32> to vector<2x128xf32>
    %52 = arith.addf %51, %49 : vector<2x128xf32>
    %c0_45 = arith.constant 0 : index
    %c0_46 = arith.constant 0 : index
    %c0_47 = arith.constant 0 : index
    %c0_48 = arith.constant 0 : index
    %53 = vector.load %arg5[%c0_45, %c0_46, %c0_47, %c0_48] : memref<1x1x2x128xf32, #tpu.memory_space<vmem>>, vector<1x1x2x128xf32>
    %54 = vector.shape_cast %53 : vector<1x1x2x128xf32> to vector<2x128xf32>
    %55 = vector.shape_cast %52 : vector<2x128xf32> to vector<1x1x2x128xf32>
    tpu.vector_store %arg5[%c0_45, %c0_46, %c0_47, %c0_48], %55 {strides = array<i32>} : memref<1x1x2x128xf32, #tpu.memory_space<vmem>>, vector<1x1x2x128xf32>,
    return
  }
  func.func @transform_0(%arg0: i32, %arg1: i32, %arg2: i32) -> (i32, i32, i32, i32) {
    %c1_i32 = arith.constant 1 : i32
    %0 = arith.muli %arg1, %c1_i32 : i32
    %1 = arith.addi %0, %arg2 : i32
    %c0_i32 = arith.constant 0 : i32
    %c0_i32_0 = arith.constant 0 : i32
    %c0_i32_1 = arith.constant 0 : i32
    return %arg0, %c0_i32, %1, %c0_i32_0 : i32, i32, i32, i32
  }
  func.func @transform_1(%arg0: i32, %arg1: i32, %arg2: i32) -> (i32, i32, i32, i32) {
    %c1_i32 = arith.constant 1 : i32
    %0 = arith.muli %arg1, %c1_i32 : i32
    %1 = arith.addi %0, %arg2 : i32
    %c0_i32 = arith.constant 0 : i32
    %c0_i32_0 = arith.constant 0 : i32
    %c0_i32_1 = arith.constant 0 : i32
    return %arg0, %c0_i32, %1, %c0_i32_0 : i32, i32, i32, i32
  }
  func.func @transform_2(%arg0: i32, %arg1: i32, %arg2: i32) -> (i32, i32, i32, i32) {
    %c0_i32 = arith.constant 0 : i32
    %c0_i32_0 = arith.constant 0 : i32
    %c0_i32_1 = arith.constant 0 : i32
    return %arg0, %arg1, %c0_i32, %c0_i32_0 : i32, i32, i32, i32
  }
}

</mosaic_0001>

<llo_original>
// kernel: tpu_custom_call.1
$region0: #{tpu_custom_call.1}
  #allocation0 [shape = 'u32[]', space=smem, size = 0x4, offset = 0x4, fixed_abs, tag = 'smem constant byte address 0x4 - core index']
  #allocation1 [shape = 'u32[72,128]{1,0:T(1,128)}', space=vmem, size = 0x9000, scoped, tag = 'internal scratch']
  %s0 = inlined_call_operand.hbm [shape: f32[2,4,2,128], index: 0, kind: input, shape index: {}]
  %s1 = inlined_call_operand.hbm [shape: f32[2,4,2,128], index: 1, kind: input, shape index: {}]
  %s2 = inlined_call_operand.hbm [shape: f32[2,1,2,128], index: 2, kind: output, shape index: {}]
  %s3 = sld [smem:[#allocation0]]
  $region53: #{tpu_custom_call.1} parent=0
    _
  %s5 = ssub.s32 1, %s3
  %s6 = scalar_select 0, %s5, %s3
  $region1: #{tpu_custom_call.1} parent=0
    #allocation2 [shape = 'u8[8192]{0}', space=vmem, size = 0x2000, scoped, tag = 'input window, operand 0']
    #allocation3 [shape = 's32[2]{0}', space=sflag, size = 0x8, scoped, tag = 'scoped memory for tpu_custom_call.1']
    #allocation4 [shape = 's32[2]{0}', space=sflag, size = 0x8, scoped, tag = 'scoped memory for tpu_custom_call.1']
    #allocation5 [shape = 'u8[8192]{0}', space=vmem, size = 0x2000, scoped, tag = 'input window, operand 1']
    #allocation6 [shape = 's32[2]{0}', space=sflag, size = 0x8, scoped, tag = 'scoped memory for tpu_custom_call.1']
    #allocation7 [shape = 'u8[2048]{0}', space=vmem, size = 0x800, scoped, tag = 'output window, operand 0']
    %7 = vsyncpa [#allocation3], 0
    %s8 = scalar_lea.sflag [#allocation3], 1
    %9 = vsyncpa %s8, 0
    %10 = vsyncpa [#allocation6], 0
    %s11 = scalar_lea.sflag [#allocation6], 1
    %12 = vsyncpa %s11, 0
    %13 = vsyncpa [#allocation4], 0
    %s14 = scalar_lea.sflag [#allocation4], 1
    %15 = vsyncpa %s14, 0
    loop: start=0, step=1, limit=4
    $region2: #{tpu_custom_call.1} parent=1 // loop_pre_header
      _
    $region3: #{tpu_custom_call.1} parent=1 // loop_header
      %s17 = sphi 0, %s21
      %p18 = scmp.ge.s32.totalorder %s17, 4
      %s24 = sphi 0, %s43
      %s25 = sphi 0, %s39
      %s26 = sphi 0, %s35
      %s27 = sphi 0, %s24
      %s28 = sphi 0, %s25
      %s29 = sphi 0, %s26
      %s30 = sphi 0, %s27
      %s31 = sphi 0, %s28
      %s32 = sphi 0, %s29
      %s50 = sphi 0, %s52
      %s53 = sphi 0, %s50
      %s54 = sphi 0, %s53
      %s70 = sphi 0, %s54
      %s80 = sphi 0, %s82
      %s83 = sphi 0, %s80
      %s84 = sphi 0, %s83
      %s100 = sphi 0, %s84
      %s108 = sphi 0, %s110
      %s111 = sphi 0, %s108
      %s112 = sphi 0, %s111
      %s128 = sphi 0, %s112
    $region4: #{tpu_custom_call.1} parent=1 // loop_header_branch
      %20 = sbr.rel (%p18) target = $region8
    $region5: #{tpu_custom_call.1} parent=1 // loop_body
      %s22 = ssub.s32 %s17, 1
      %s23 = ssub.s32 %s17, 2
      %s33 = sadd.s32 1, %s26
      %p34 = scmp.ge.s32.totalorder %s33, 1
      %s35 = scalar_select %p34, 0, %s33
      %s36 = sadd.s32 1, %s25
      %s37 = scalar_select %p34, %s36, %s25
      %p38 = scmp.ge.s32.totalorder %s37, 1
      %s39 = scalar_select %p38, 0, %s37
      %s40 = sadd.s32 1, %s24
      %s41 = scalar_select %p38, %s40, %s24
      %p42 = scmp.ge.s32.totalorder %s41, 2
      %s43 = scalar_select %p42, 0, %s41
      %s44 = sadd.s32 %s25, %s26
      %s45 = sadd.s32 %s39, %s35
      %s46 = ssub.s32 %s24, %s43
      %s47 = ssub.s32 %s44, %s45
      %s48 = sor.u32 %s46, %s47
      %p49 = scmp.eq.s32.totalorder %s48, 0
      %s51 = sadd.s32 %s50, 1
      %s52 = scalar_select %p49, %s50, %s51
      %p55 = pneg %p49
      %p56 = scmp.eq.s32.totalorder %s17, 1
      %p57 = por %p55, %p56
      %p58 = scmp.ne.s32.totalorder %s50, %s53
      %p59 = scmp.eq.s32.totalorder %s17, 0
      %p60 = por %p58, %p59
      %p61 = scmp.ne.s32.totalorder %s50, %s53
      %p62 = scmp.eq.s32.totalorder %s22, 1
      %p63 = por %p61, %p62
      %p64 = scmp.ne.s32.totalorder %s53, %s54
      %p65 = scmp.eq.s32.totalorder %s22, 0
      %p66 = por %p64, %p65
      %p67 = scmp.ne.s32.totalorder %s53, %s54
      %p68 = scmp.eq.s32.totalorder %s23, 1
      %p69 = por %p67, %p68
      %p71 = scmp.ne.s32.totalorder %s54, %s70
      %p72 = scmp.eq.s32.totalorder %s23, 0
      %p73 = por %p71, %p72
      %s74 = sadd.s32 %s25, %s26
      %s75 = sadd.s32 %s39, %s35
      %s76 = ssub.s32 %s24, %s43
      %s77 = ssub.s32 %s74, %s75
      %s78 = sor.u32 %s76, %s77
      %p79 = scmp.eq.s32.totalorder %s78, 0
      %s81 = sadd.s32 %s80, 1
      %s82 = scalar_select %p79, %s80, %s81
      %p85 = pneg %p79
      %p86 = scmp.eq.s32.totalorder %s17, 1
      %p87 = por %p85, %p86
      %p88 = scmp.ne.s32.totalorder %s80, %s83
      %p89 = scmp.eq.s32.totalorder %s17, 0
      %p90 = por %p88, %p89
      %p91 = scmp.ne.s32.totalorder %s80, %s83
      %p92 = scmp.eq.s32.totalorder %s22, 1
      %p93 = por %p91, %p92
      %p94 = scmp.ne.s32.totalorder %s83, %s84
      %p95 = scmp.eq.s32.totalorder %s22, 0
      %p96 = por %p94, %p95
      %p97 = scmp.ne.s32.totalorder %s83, %s84
      %p98 = scmp.eq.s32.totalorder %s23, 1
      %p99 = por %p97, %p98
      %p101 = scmp.ne.s32.totalorder %s84, %s100
      %p102 = scmp.eq.s32.totalorder %s23, 0
      %p103 = por %p101, %p102
      %s104 = ssub.s32 %s24, %s43
      %s105 = ssub.s32 %s25, %s39
      %s106 = sor.u32 %s104, %s105
      %p107 = scmp.eq.s32.totalorder %s106, 0
      %s109 = sadd.s32 %s108, 1
      %s110 = scalar_select %p107, %s108, %s109
      %p113 = pneg %p107
      %p114 = scmp.eq.s32.totalorder %s17, 1
      %p115 = por %p113, %p114
      %p116 = scmp.ne.s32.totalorder %s108, %s111
      %p117 = scmp.eq.s32.totalorder %s17, 0
      %p118 = por %p116, %p117
      %p119 = scmp.ne.s32.totalorder %s108, %s111
      %p120 = scmp.eq.s32.totalorder %s22, 1
      %p121 = por %p119, %p120
      %p122 = scmp.ne.s32.totalorder %s111, %s112
      %p123 = scmp.eq.s32.totalorder %s22, 0
      %p124 = por %p122, %p123
      %p125 = scmp.ne.s32.totalorder %s111, %s112
      %p126 = scmp.eq.s32.totalorder %s23, 1
      %p127 = por %p125, %p126
      %p129 = scmp.ne.s32.totalorder %s112, %s128
      %p130 = scmp.eq.s32.totalorder %s23, 0
      %p131 = por %p129, %p130
      %p132 = scmp.le.s32.totalorder 1, %s17
      %p133 = scmp.lt.s32.totalorder %s17, 3
      %p134 = pnand %p132, %p133
      %p135 = pneg %p134
      // Predicated region
      $region9: #{tpu_custom_call.1} parent=5 // pred_check
        _
      $region10: #{tpu_custom_call.1} parent=5 // pred_check_branch
        %137 = sbr.rel (%p134) target = $region12
      $region11: #{tpu_custom_call.1} parent=5 // pred_region
        %s138 = ssub.s32 %s17, 1
      $region12: #{tpu_custom_call.1} parent=5 // pred_fallthru
        _
      %p139 = scmp.lt.s32.totalorder %s17, 2
      // Predicated region
      $region13: #{tpu_custom_call.1} parent=5 // pred_check
        %p140 = pneg %p139
      $region14: #{tpu_custom_call.1} parent=5 // pred_check_branch
        %142 = sbr.rel (%p140) target = $region16
      $region15: #{tpu_custom_call.1} parent=5 // pred_region
        // Predicated region
        $region17: #{tpu_custom_call.1} parent=15 // pred_check
          %p143 = pneg %p60
        $region18: #{tpu_custom_call.1} parent=15 // pred_check_branch
          %145 = sbr.rel (%p143) target = $region20
        $region19: #{tpu_custom_call.1} parent=15 // pred_region
          %s146 = sand.u32 %s50, 1
          %s147 = scalar_lea.sflag [#allocation3], %s146
          %s148 = sand.u32 %s50, 1
          %s149 = smul.addr %s148, 8
          %s150 = scalar_lea.vmem [#allocation2], %s149
          %s151 = sadd.s32 %s25, %s26
          %153 = vsyncadd %s147, 0
          %s154 = smul.addr %s24, 4
          %s155 = sadd.s32 %s151, %s154
          %s156 = smul.addr %s155, 2
          %s157 = scalar_lea.hbm %s0, %s156
          %s158 = sshll.u32 %s157, 4
          %s159 = int_to_ptr.hbm [resolvable:$true] %s158
          %s160 = sshll.u32 %s150, 4
          %s161 = int_to_ptr.vmem [resolvable:$true] %s160
          %166 = dma.hbm_to_vmem [thread:$0]  %s159, 128, %s161, %s147, 32, 32, 2
        $region20: #{tpu_custom_call.1} parent=15 // pred_fallthru
          _
        // Predicated region
        $region21: #{tpu_custom_call.1} parent=15 // pred_check
          %p167 = pneg %p90
        $region22: #{tpu_custom_call.1} parent=15 // pred_check_branch
          %169 = sbr.rel (%p167) target = $region24
        $region23: #{tpu_custom_call.1} parent=15 // pred_region
          %s170 = sand.u32 %s80, 1
          %s171 = scalar_lea.sflag [#allocation6], %s170
          %s172 = sand.u32 %s80, 1
          %s173 = smul.addr %s172, 8
          %s174 = scalar_lea.vmem [#allocation5], %s173
          %s175 = sadd.s32 %s25, %s26
          %177 = vsyncadd %s171, 0
          %s178 = smul.addr %s24, 4
          %s179 = sadd.s32 %s175, %s178
          %s180 = smul.addr %s179, 2
          %s181 = scalar_lea.hbm %s1, %s180
          %s182 = sshll.u32 %s181, 4
          %s183 = int_to_ptr.hbm [resolvable:$true] %s182
          %s184 = sshll.u32 %s174, 4
          %s185 = int_to_ptr.vmem [resolvable:$true] %s184
          %190 = dma.hbm_to_vmem [thread:$0]  %s183, 128, %s185, %s171, 32, 32, 2
        $region24: #{tpu_custom_call.1} parent=15 // pred_fallthru
          _
      $region16: #{tpu_custom_call.1} parent=5 // pred_fallthru
        _
      %p191 = scmp.le.s32.totalorder 1, %s17
      %p192 = scmp.lt.s32.totalorder %s17, 3
      %p193 = pnand %p191, %p192
      %p194 = pneg %p193
      // Predicated region
      $region25: #{tpu_custom_call.1} parent=5 // pred_check
        _
      $region26: #{tpu_custom_call.1} parent=5 // pred_check_branch
        %196 = sbr.rel (%p193) target = $region28
      $region27: #{tpu_custom_call.1} parent=5 // pred_region
        %s197 = ssub.s32 %s17, 1
        %s198 = sand.u32 %s53, 1
        %s199 = scalar_lea.sflag [#allocation3], %s198
        %s200 = sand.u32 %s53, 1
        %s201 = smul.addr %s200, 8
        %s202 = scalar_lea.vmem [#allocation2], %s201
        // Predicated region
        $region29: #{tpu_custom_call.1} parent=27 // pred_check
          %p203 = pneg %p66
        $region30: #{tpu_custom_call.1} parent=27 // pred_check_branch
          %205 = sbr.rel (%p203) target = $region32
        $region31: #{tpu_custom_call.1} parent=27 // pred_region
          %207 = dma.done %s199, 128
        $region32: #{tpu_custom_call.1} parent=27 // pred_fallthru
          _
        %s208 = sand.u32 %s83, 1
        %s209 = scalar_lea.sflag [#allocation6], %s208
        %s210 = sand.u32 %s83, 1
        %s211 = smul.addr %s210, 8
        %s212 = scalar_lea.vmem [#allocation5], %s211
        // Predicated region
        $region33: #{tpu_custom_call.1} parent=27 // pred_check
          %p213 = pneg %p96
        $region34: #{tpu_custom_call.1} parent=27 // pred_check_branch
          %215 = sbr.rel (%p213) target = $region36
        $region35: #{tpu_custom_call.1} parent=27 // pred_region
          %217 = dma.done %s209, 128
        $region36: #{tpu_custom_call.1} parent=27 // pred_fallthru
          _
        %s218 = sand.u32 %s53, 1
        %s219 = scalar_lea.sflag [#allocation3], %s218
        %s220 = sand.u32 %s53, 1
        %s221 = smul.addr %s220, 8
        %s222 = scalar_lea.vmem [#allocation2], %s221
        %p223 = pneg %p66
        %p224 = pneg %p63
        %s225 = sand.u32 %s83, 1
        %s226 = scalar_lea.sflag [#allocation6], %s225
        %s227 = sand.u32 %s83, 1
        %s228 = smul.addr %s227, 8
        %s229 = scalar_lea.vmem [#allocation5], %s228
        %p230 = pneg %p96
        %p231 = pneg %p93
        %p232 = pneg %p124
        %p233 = pneg %p121
        %s234 = sand.u32 %s111, 1
        %s235 = scalar_lea.sflag [#allocation4], %s234
        %s236 = sand.u32 %s111, 1
        %s237 = smul.addr %s236, 2
        %s238 = scalar_lea.vmem [#allocation7], %s237
        %s239 = sadd.s32 %s28, %s29
        %s240 = sadd.s32 %s28, %s29
        %p241 = scmp.eq.s32.totalorder %s29, 0
        // Predicated region
        $region37: #{tpu_custom_call.1} parent=27 // pred_check
          %p242 = pneg %p241
        $region38: #{tpu_custom_call.1} parent=27 // pred_check_branch
          %244 = sbr.rel (%p242) target = $region40
        $region39: #{tpu_custom_call.1} parent=27 // pred_region
          %245 = vst [vmem:[%s238] sm:$0x3] 0.0
        $region40: #{tpu_custom_call.1} parent=27 // pred_fallthru
          _
        %v246 = vld [vmem:[%s202] sm:$0x3]
        %v247 = vld [vmem:[%s212] sm:$0x3]
        %s248 = scalar_lea.vmem %s202, 2 [#allocation2]
        %v249 = vld [vmem:[%s248] sm:$0x3]
        %s250 = scalar_lea.vmem %s212, 2 [#allocation5]
        %v251 = vld [vmem:[%s250] sm:$0x3]
        %v252 = vmax.f32 %v246, %v249
        %vm253 = vcmp.gt.f32.partialorder %v251, %v247
        %v254 = vsel %vm253, %v251, %v247
        %v255 = vsel %vm253, %v249, %v246
        %s256 = scalar_lea.vmem %s202, 4 [#allocation2]
        %v257 = vld [vmem:[%s256] sm:$0x3]
        %s258 = scalar_lea.vmem %s212, 4 [#allocation5]
        %v259 = vld [vmem:[%s258] sm:$0x3]
        %v260 = vmax.f32 %v252, %v257
        %vm261 = vcmp.gt.f32.partialorder %v259, %v254
        %v262 = vsel %vm261, %v259, %v254
        %v263 = vsel %vm261, %v257, %v255
        %s264 = scalar_lea.vmem %s202, 6 [#allocation2]
        %v265 = vld [vmem:[%s264] sm:$0x3]
        %s266 = scalar_lea.vmem %s212, 6 [#allocation5]
        %v267 = vld [vmem:[%s266] sm:$0x3]
        %v268 = vmax.f32 %v260, %v265
        %vm269 = vcmp.gt.f32.partialorder %v267, %v262
        %v270 = vsel %vm269, %v265, %v263
        %v271 = vsub.f32 %v246, %v268
        %v272 = vmul.f32 %v271, 1.442695
        %v273 = vpow.pop %v272
        %v274 = vsub.f32 %v249, %v268
        %v275 = vmul.f32 %v274, 1.442695
        %v276 = vpow.pop %v275
        %v277 = vadd.f32 %v273, %v276
        %v278 = vsub.f32 %v257, %v268
        %v279 = vmul.f32 %v278, 1.442695
        %v280 = vpow.pop %v279
        %v281 = vadd.f32 %v277, %v280
        %v282 = vsub.f32 %v265, %v268
        %v283 = vmul.f32 %v282, 1.442695
        %v284 = vpow.pop %v283
        %v285 = vadd.f32 %v281, %v284
        %v286 = vlog2.pop %v285
        %v287 = vmul.f32 %v286, 0.6931472
        %v288 = vadd.f32 %v268, %v287
        %v289 = vsub.f32 %v288, %v270
        %v290 = vld [vmem:[%s238] sm:$0x3]
        %v291 = vadd.f32 %v290, %v289
        %292 = vst [vmem:[%s238] sm:$0x3] %v291
        %s293 = sand.u32 %s111, 1
        %s294 = scalar_lea.sflag [#allocation4], %s293
        %s295 = sand.u32 %s111, 1
        %s296 = smul.addr %s295, 2
        %s297 = scalar_lea.vmem [#allocation7], %s296
        // Predicated region
        $region41: #{tpu_custom_call.1} parent=27 // pred_check
          %p298 = pneg %p121
        $region42: #{tpu_custom_call.1} parent=27 // pred_check_branch
          %300 = sbr.rel (%p298) target = $region44
        $region43: #{tpu_custom_call.1} parent=27 // pred_region
          %302 = vsyncadd %s294, 0
          %s303 = sadd.s32 %s28, %s27
          %s304 = smul.addr %s303, 2
          %s305 = scalar_lea.hbm %s2, %s304
          %s307 = sshll.u32 %s297, 4
          %s308 = int_to_ptr.vmem [resolvable:$true] %s307
          %s309 = sshll.u32 %s305, 4
          %s310 = int_to_ptr.hbm [resolvable:$true] %s309
          %312 = dma.vmem_to_hbm [thread:$0]  %s308, 32, %s310, %s294
        $region44: #{tpu_custom_call.1} parent=27 // pred_fallthru
          _
      $region28: #{tpu_custom_call.1} parent=5 // pred_fallthru
        _
      %p313 = scmp.le.s32.totalorder 2, %s17
      // Predicated region
      $region45: #{tpu_custom_call.1} parent=5 // pred_check
        %p314 = pneg %p313
      $region46: #{tpu_custom_call.1} parent=5 // pred_check_branch
        %316 = sbr.rel (%p314) target = $region48
      $region47: #{tpu_custom_call.1} parent=5 // pred_region
        %s317 = ssub.s32 %s17, 2
        // Predicated region
        $region49: #{tpu_custom_call.1} parent=47 // pred_check
          %p318 = pneg %p127
        $region50: #{tpu_custom_call.1} parent=47 // pred_check_branch
          %320 = sbr.rel (%p318) target = $region52
        $region51: #{tpu_custom_call.1} parent=47 // pred_region
          %s321 = sand.u32 %s112, 1
          %s322 = scalar_lea.sflag [#allocation4], %s321
          %s323 = sand.u32 %s112, 1
          %s324 = smul.addr %s323, 2
          %s325 = scalar_lea.vmem [#allocation7], %s324
          %327 = dma.done %s322, 32
        $region52: #{tpu_custom_call.1} parent=47 // pred_fallthru
          _
      $region48: #{tpu_custom_call.1} parent=5 // pred_fallthru
        _
    $region6: #{tpu_custom_call.1} parent=1 // loop_footer
      %s21 = sadd.s32 1, %s17
    $region7: #{tpu_custom_call.1} parent=1 // loop_footer_branch
      %16 = sbr.rel target = $region3
    $region8: #{tpu_custom_call.1} parent=1 // loop_exit
      _
    %328 = vsyncpa [#allocation3], 1
    %s329 = scalar_lea.sflag [#allocation3], 1
    %330 = vsyncpa %s329, 1
    %331 = vsyncpa [#allocation6], 1
    %s332 = scalar_lea.sflag [#allocation6], 1
    %333 = vsyncpa %s332, 1
    %334 = vsyncpa [#allocation4], 1
    %s335 = scalar_lea.sflag [#allocation4], 1
    %336 = vsyncpa %s335, 1

</llo_original>
